<compile_context>
chip_gen: v6e
topology: v6e:2x2x1
jax: 0.10.0
libtpu: 0.0.40
codegen_flags: <defaults>
</compile_context>

<pallas_src>
from functools import partial

import jax
import jax.numpy as jnp
from jax.experimental import pallas as pl
from jax.experimental.pallas import tpu as pltpu


def _ceil_to(x, m):
    return ((x + m - 1) // m) * m


def _fused_kernel(shifts, off, chunk, inv_hw,
                  x_ref, wf_ref, bias_ref, mask_ref, wh_ref, bh_ref, out_ref):
    """One grid step == one batch element.

    x_ref    : (Cc, LPAD)   bf16  channel-major, spatially padded + flattened image
                                  (img and s5p channels concatenated); data at [off, off+S).
    wf_ref   : (FPAD, KPAD) bf16  block-diagonal fused 3x3 conv weight, K = tap*Cc + c.
    bias_ref : (FPAD, 1)    f32   fused conv bias (features on sublanes).
    mask_ref : (1, SP)      f32   1.0 at valid interior spatial positions, else 0.
    wh_ref   : (FPAD, 1)    f32   regression-head weight.
    bh_ref   : (1, 1)       f32   regression-head bias (SMEM scalar).
    out_ref  : (1, 8, 128)  f32   lane-dense per-batch output slab.
    """
    cc = x_ref.shape[0]
    fpad, kpad = wf_ref.shape
    sp = mask_ref.shape[1]
    n_chunks = sp // chunk
    pad_rows = kpad - 9 * cc

    w = wf_ref[...]                 # resident bf16 fused weight (hoisted out of the loop)
    bias = bias_ref[...]            # (fpad, 1)

    # Pooled-sum accumulator lives in vregs; chunking keeps each f32 intermediate
    # at (fpad, chunk) so nothing spills to VMEM.
    acc = jnp.zeros((fpad, 1), jnp.float32)
    for j in range(n_chunks):       # static, fully unrolled spatial sub-tiles
        base = off + j * chunk
        # In-kernel "im2col": 9 statically shifted lane slices stacked along
        # sublanes -> (KPAD, chunk) bf16 patch block (K-major layout).
        pieces = [x_ref[:, base + s: base + s + chunk] for s in shifts]
        if pad_rows:
            pieces.append(jnp.zeros((pad_rows, chunk), x_ref.dtype))
        patches = jnp.concatenate(pieces, axis=0)

        # Both backbones in ONE block-diagonal matmul (bf16 in, f32 accumulate).
        conv = jnp.dot(w, patches, preferred_element_type=jnp.float32)   # (fpad, chunk)
        conv = jnp.maximum(conv + bias, 0.0)
        # Zero padded-border / lane-tail columns, then partial global-avg-pool sum.
        conv = conv * mask_ref[:, j * chunk:(j + 1) * chunk]
        acc = acc + jnp.sum(conv, axis=1, keepdims=True)

    pooled = acc * inv_hw           # (fpad, 1): [S2 feats ; S5P feats], mean-pooled
    # Regression head (N=1) on the VPU/XLU -- an MXU matmul would be degenerate.
    head = jnp.sum(pooled * wh_ref[...]) + bh_ref[0, 0]
    out_ref[...] = jnp.full(out_ref.shape, head, dtype=out_ref.dtype)


def multi_backbone_regression_head(img, s5p, params, *, lane_chunk=None):
    B, C2, H, W = img.shape
    B5, C5, H5, W5 = s5p.shape
    assert B == B5 and H == H5 and W == W5, "kernel assumes matching batch/spatial dims"
    F = params["w2"].shape[0]
    Cc = C2 + C5
    Hp, Wp = H + 2, W + 2
    S = Hp * Wp                               # padded spatial positions (conv evaluated on all, tail masked)
    HW = H * W

    SP = _ceil_to(S, 128)                     # lane-dense conv-output extent
    OFF = _ceil_to(Wp + 1, 128)               # left margin so negative tap shifts stay in-bounds
    LPAD = _ceil_to(OFF + SP + Wp + 1, 128)   # streamed buffer length (lane-aligned)
    KPAD = _ceil_to(9 * Cc, 16)               # contraction dim (bf16 sublane-packed)
    FPAD = _ceil_to(2 * F, 16)                # concatenated feature dim

    # Static 3x3 tap shifts on the flattened padded spatial axis.
    shifts = tuple((ky - 1) * Wp + (kx - 1) for ky in range(3) for kx in range(3))

    # Spatial sub-tile width for the in-kernel epilogue chunking (SP is a multiple of 128).
    if lane_chunk is None:
        lane_chunk = next(c for c in (512, 256, 128) if SP % c == 0)
    assert SP % lane_chunk == 0 and lane_chunk % 128 == 0
    # TODO(synk): for very large H*W, replace the unrolled chunk loop + whole-image
    # block with spatially tiled blocks (halo via manual DMA) and a fori_loop.

    # ---- wrapper prep: spatial pad + channel concat + flatten + single bf16 cast ----
    xcat = jnp.concatenate(
        [jnp.pad(img, ((0, 0), (0, 0), (1, 1), (1, 1))),
         jnp.pad(s5p, ((0, 0), (0, 0), (1, 1), (1, 1)))], axis=1)         # (B, Cc, Hp, Wp)
    xflat = xcat.reshape(B, Cc, S).astype(jnp.bfloat16)                   # spatial on lanes
    xbuf = jnp.zeros((B, Cc, LPAD), jnp.bfloat16).at[:, :, OFF:OFF + S].set(xflat)

    # Block-diagonal fused conv weight, K index = tap*Cc + c (tap = ky*3 + kx):
    # rows [:F] read only img channels, rows [F:2F] read only s5p channels, so the
    # features land already concatenated (the cat() of the module is free).
    w2_t = params["w2"].transpose(0, 2, 3, 1).reshape(F, 9, C2)
    w5_t = params["w5"].transpose(0, 2, 3, 1).reshape(F, 9, C5)
    blk2 = jnp.concatenate([w2_t, jnp.zeros((F, 9, C5), jnp.float32)], axis=2).reshape(F, 9 * Cc)
    blk5 = jnp.concatenate([jnp.zeros((F, 9, C2), jnp.float32), w5_t], axis=2).reshape(F, 9 * Cc)
    wf = jnp.zeros((FPAD, KPAD), jnp.float32)
    wf = wf.at[:F, :9 * Cc].set(blk2).at[F:2 * F, :9 * Cc].set(blk5).astype(jnp.bfloat16)

    bias = jnp.zeros((FPAD, 1), jnp.float32)
    bias = bias.at[:F, 0].set(params["b2"]).at[F:2 * F, 0].set(params["b5"])

    # Valid-position mask: interior of the padded image; border + lane tail -> 0.
    yy, xx = jnp.meshgrid(jnp.arange(Hp), jnp.arange(Wp), indexing="ij")
    valid = ((yy >= 1) & (yy <= H) & (xx >= 1) & (xx <= W)).astype(jnp.float32).reshape(1, S)
    mask = jnp.zeros((1, SP), jnp.float32).at[:, :S].set(valid)

    wh = jnp.zeros((FPAD, 1), jnp.float32).at[:2 * F, 0].set(params["wh"].reshape(2 * F))
    bh = params["bh"].reshape(1, 1).astype(jnp.float32)

    kernel = partial(_fused_kernel, shifts, OFF, lane_chunk, 1.0 / HW)

    grid_spec = pltpu.PrefetchScalarGridSpec(
        num_scalar_prefetch=0,
        grid=(B,),
        in_specs=[
            pl.BlockSpec((None, Cc, LPAD), lambda b: (b, 0, 0)),   # streamed per-batch image buffer
            pl.BlockSpec((FPAD, KPAD), lambda b: (0, 0)),          # fused conv weight (resident)
            pl.BlockSpec((FPAD, 1), lambda b: (0, 0)),             # fused conv bias (resident)
            pl.BlockSpec((1, SP), lambda b: (0, 0)),               # valid-position mask (resident)
            pl.BlockSpec((FPAD, 1), lambda b: (0, 0)),             # head weight (resident)
            pl.BlockSpec(memory_space=pltpu.MemorySpace.SMEM),     # head bias scalar
        ],
        out_specs=pl.BlockSpec((1, 8, 128), lambda b: (b, 0, 0)),  # lane-dense per-batch slab
    )

    out = pl.pallas_call(
        kernel,
        out_shape=jax.ShapeDtypeStruct((B, 8, 128), jnp.float32),
        grid_spec=grid_spec,
        compiler_params=pltpu.CompilerParams(
            # Batch axis shards across v7x's two TensorCores.
            # TODO(synk): for B == 1 on v7x, add a size-2 core-parallel spatial split
            # with two partial pooled accumulators combined in an epilogue.
            dimension_semantics=("parallel",),
            # vmem_limit_bytes deliberately left at the compiler default: footprints
            # here are tiny and requesting v7x's full 64 MiB would starve compiler
            # scratch.  (Resident specs could also be pl.Buffered(1) once KPAD/FPAD
            # scale up; negligible at these sizes.)
        ),
    )(xbuf, wf, bias, mask, wh, bh)

    return out[:, 0, :1]                                           # (B, 1)


def _reference(img, s5p, params):
    """Pure-JAX f32 reference matching the PyTorch semantics."""
    def backbone(x, w, b):
        y = jax.lax.conv_general_dilated(
            x, w, window_strides=(1, 1), padding="SAME",
            dimension_numbers=("NCHW", "OIHW", "NCHW"))
        y = y + b[None, :, None, None]
        y = jnp.maximum(y, 0.0)
        return jnp.mean(y, axis=(2, 3))                            # global avg pool -> (B, F)

    f2 = backbone(img, params["w2"], params["b2"])
    f5 = backbone(s5p, params["w5"], params["b5"])
    feat = jnp.concatenate([f2, f5], axis=1)
    return feat @ params["wh"].T + params["bh"]


if __name__ == "__main__":
    B, C2, C5, H, W, F = 2, 4, 3, 16, 16, 32

    key = jax.random.PRNGKey(0)
    k = jax.random.split(key, 8)
    params = {
        "w2": 0.1 * jax.random.normal(k[0], (F, C2, 3, 3), jnp.float32),
        "b2": 0.1 * jax.random.normal(k[1], (F,), jnp.float32),
        "w5": 0.1 * jax.random.normal(k[2], (F, C5, 3, 3), jnp.float32),
        "b5": 0.1 * jax.random.normal(k[3], (F,), jnp.float32),
        "wh": 0.1 * jax.random.normal(k[4], (1, 2 * F), jnp.float32),
        "bh": 0.1 * jax.random.normal(k[5], (1,), jnp.float32),
    }
    img = jax.random.normal(k[6], (B, C2, H, W), jnp.float32)
    s5p = jax.random.normal(k[7], (B, C5, H, W), jnp.float32)

    # lane_chunk=128 with SP=384 forces three in-kernel spatial sub-tiles, exercising
    # the chunked epilogue / register accumulator path.
    out = multi_backbone_regression_head(img, s5p, params, lane_chunk=128)
    out = jax.block_until_ready(out)

    ref = _reference(img, s5p, params)
    assert out.shape == (B, 1), out.shape
    # Inputs + conv weights run on the MXU in bf16 (f32 accumulation); compare against
    # the full-f32 reference with a mixed-precision-appropriate tolerance.
    assert jnp.allclose(out, ref, atol=2e-2, rtol=2e-2), (out, ref)
    print("KERNEL_OK")
</pallas_src>

<mosaic_0001>
module attributes {stable_mosaic.version = 11 : i64} {
  func.func @_fused_kernel(%arg0: i32, %arg1: memref<1x7x640xbf16, #tpu.memory_space<vmem>>, %arg2: memref<64x64xbf16, #tpu.memory_space<vmem>>, %arg3: memref<64x1xf32, #tpu.memory_space<vmem>>, %arg4: memref<1x384xf32, #tpu.memory_space<vmem>>, %arg5: memref<64x1xf32, #tpu.memory_space<vmem>>, %arg6: memref<1x1xf32, #tpu.memory_space<smem>>, %arg7: memref<1x8x128xf32, #tpu.memory_space<vmem>>) attributes {dimension_semantics = [#tpu.dimension_semantics<parallel>], iteration_bounds = array<i64: 2>, scalar_prefetch = 0 : i64, scratch_operands = 0 : i64, tpu.core_type = #tpu.core_type<tc>, window_params = [{transform_indices = @transform_0, window_bounds = array<i64: 1, 7, 640>}, {pipeline_mode = #tpu.pipeline_mode<synchronous>, transform_indices = @transform_1, window_bounds = array<i64: 64, 64>}, {pipeline_mode = #tpu.pipeline_mode<synchronous>, transform_indices = @transform_2, window_bounds = array<i64: 64, 1>}, {pipeline_mode = #tpu.pipeline_mode<synchronous>, transform_indices = @transform_3, window_bounds = array<i64: 1, 384>}, {pipeline_mode = #tpu.pipeline_mode<synchronous>, transform_indices = @transform_4, window_bounds = array<i64: 64, 1>}, {transform_indices = @transform_5, window_bounds = array<i64: 1, 1>}, {transform_indices = @transform_6, window_bounds = array<i64: 1, 8, 128>}]} {
    %c0 = arith.constant 0 : index
    %c0_0 = arith.constant 0 : index
    %0 = vector.load %arg2[%c0, %c0_0] : memref<64x64xbf16, #tpu.memory_space<vmem>>, vector<64x64xbf16>
    %c0_1 = arith.constant 0 : index
    %c0_2 = arith.constant 0 : index
    %1 = vector.load %arg3[%c0_1, %c0_2] : memref<64x1xf32, #tpu.memory_space<vmem>>, vector<64x1xf32>
    %cst = arith.constant 0.000000e+00 : f32
    %2 = vector.broadcast %cst : f32 to vector<64x1xf32>
    %c0_3 = arith.constant 0 : index
    %c0_4 = arith.constant 0 : index
    %c109 = arith.constant 109 : index
    %3 = vector.load %arg1[%c0_3, %c0_4, %c109] : memref<1x7x640xbf16, #tpu.memory_space<vmem>>, vector<1x7x128xbf16>
    %4 = vector.shape_cast %3 : vector<1x7x128xbf16> to vector<7x128xbf16>
    %c0_5 = arith.constant 0 : index
    %c0_6 = arith.constant 0 : index
    %c110 = arith.constant 110 : index
    %5 = vector.load %arg1[%c0_5, %c0_6, %c110] : memref<1x7x640xbf16, #tpu.memory_space<vmem>>, vector<1x7x128xbf16>
    %6 = vector.shape_cast %5 : vector<1x7x128xbf16> to vector<7x128xbf16>
    %c0_7 = arith.constant 0 : index
    %c0_8 = arith.constant 0 : index
    %c111 = arith.constant 111 : index
    %7 = vector.load %arg1[%c0_7, %c0_8, %c111] : memref<1x7x640xbf16, #tpu.memory_space<vmem>>, vector<1x7x128xbf16>
    %8 = vector.shape_cast %7 : vector<1x7x128xbf16> to vector<7x128xbf16>
    %c0_9 = arith.constant 0 : index
    %c0_10 = arith.constant 0 : index
    %c127 = arith.constant 127 : index
    %9 = vector.load %arg1[%c0_9, %c0_10, %c127] : memref<1x7x640xbf16, #tpu.memory_space<vmem>>, vector<1x7x128xbf16>
    %10 = vector.shape_cast %9 : vector<1x7x128xbf16> to vector<7x128xbf16>
    %c0_11 = arith.constant 0 : index
    %c0_12 = arith.constant 0 : index
    %c128 = arith.constant 128 : index
    %11 = vector.load %arg1[%c0_11, %c0_12, %c128] : memref<1x7x640xbf16, #tpu.memory_space<vmem>>, vector<1x7x128xbf16>
    %12 = vector.shape_cast %11 : vector<1x7x128xbf16> to vector<7x128xbf16>
    %c0_13 = arith.constant 0 : index
    %c0_14 = arith.constant 0 : index
    %c129 = arith.constant 129 : index
    %13 = vector.load %arg1[%c0_13, %c0_14, %c129] : memref<1x7x640xbf16, #tpu.memory_space<vmem>>, vector<1x7x128xbf16>
    %14 = vector.shape_cast %13 : vector<1x7x128xbf16> to vector<7x128xbf16>
    %c0_15 = arith.constant 0 : index
    %c0_16 = arith.constant 0 : index
    %c145 = arith.constant 145 : index
    %15 = vector.load %arg1[%c0_15, %c0_16, %c145] : memref<1x7x640xbf16, #tpu.memory_space<vmem>>, vector<1x7x128xbf16>
    %16 = vector.shape_cast %15 : vector<1x7x128xbf16> to vector<7x128xbf16>
    %c0_17 = arith.constant 0 : index
    %c0_18 = arith.constant 0 : index
    %c146 = arith.constant 146 : index
    %17 = vector.load %arg1[%c0_17, %c0_18, %c146] : memref<1x7x640xbf16, #tpu.memory_space<vmem>>, vector<1x7x128xbf16>
    %18 = vector.shape_cast %17 : vector<1x7x128xbf16> to vector<7x128xbf16>
    %c0_19 = arith.constant 0 : index
    %c0_20 = arith.constant 0 : index
    %c147 = arith.constant 147 : index
    %19 = vector.load %arg1[%c0_19, %c0_20, %c147] : memref<1x7x640xbf16, #tpu.memory_space<vmem>>, vector<1x7x128xbf16>
    %20 = vector.shape_cast %19 : vector<1x7x128xbf16> to vector<7x128xbf16>
    %cst_21 = arith.constant 0.000000e+00 : bf16
    %21 = vector.broadcast %cst_21 : bf16 to vector<1x128xbf16>
    %22 = tpu.concatenate %4, %6, %8, %10, %12, %14, %16, %18, %20, %21 in 0 : vector<7x128xbf16>, vector<7x128xbf16>, vector<7x128xbf16>, vector<7x128xbf16>, vector<7x128xbf16>, vector<7x128xbf16>, vector<7x128xbf16>, vector<7x128xbf16>, vector<7x128xbf16>, vector<1x128xbf16> -> vector<64x128xbf16>
    %cst_22 = arith.constant dense<0.000000e+00> : vector<64x128xf32>
    %23 = tpu.matmul %0, %22, %cst_22 {dimension_numbers = #tpu.dot_dimension_numbers<[1], [0], [0], [1], [0, 0, 1, 1], [], []>} : vector<64x64xbf16>, vector<64x128xbf16>, vector<64x128xf32> -> vector<64x128xf32>
    %24 = vector.broadcast %1 : vector<64x1xf32> to vector<64x128xf32>
    %25 = arith.addf %23, %24 : vector<64x128xf32>
    %cst_23 = arith.constant 0.000000e+00 : f32
    %26 = vector.broadcast %cst_23 : f32 to vector<64x128xf32>
    %27 = arith.maximumf %25, %26 : vector<64x128xf32>
    %c0_24 = arith.constant 0 : index
    %c0_25 = arith.constant 0 : index
    %28 = vector.load %arg4[%c0_24, %c0_25] : memref<1x384xf32, #tpu.memory_space<vmem>>, vector<1x128xf32>
    %29 = vector.broadcast %28 : vector<1x128xf32> to vector<64x128xf32>
    %30 = arith.mulf %27, %29 : vector<64x128xf32>
    %cst_26 = arith.constant dense<0.000000e+00> : vector<64xf32>
    %31 = vector.multi_reduction <add>, %30, %cst_26 [1] : vector<64x128xf32> to vector<64xf32>
    %32 = vector.shape_cast %31 : vector<64xf32> to vector<64x1xf32>
    %33 = arith.addf %2, %32 : vector<64x1xf32>
    %c0_27 = arith.constant 0 : index
    %c0_28 = arith.constant 0 : index
    %c237 = arith.constant 237 : index
    %34 = vector.load %arg1[%c0_27, %c0_28, %c237] : memref<1x7x640xbf16, #tpu.memory_space<vmem>>, vector<1x7x128xbf16>
    %35 = vector.shape_cast %34 : vector<1x7x128xbf16> to vector<7x128xbf16>
    %c0_29 = arith.constant 0 : index
    %c0_30 = arith.constant 0 : index
    %c238 = arith.constant 238 : index
    %36 = vector.load %arg1[%c0_29, %c0_30, %c238] : memref<1x7x640xbf16, #tpu.memory_space<vmem>>, vector<1x7x128xbf16>
    %37 = vector.shape_cast %36 : vector<1x7x128xbf16> to vector<7x128xbf16>
    %c0_31 = arith.constant 0 : index
    %c0_32 = arith.constant 0 : index
    %c239 = arith.constant 239 : index
    %38 = vector.load %arg1[%c0_31, %c0_32, %c239] : memref<1x7x640xbf16, #tpu.memory_space<vmem>>, vector<1x7x128xbf16>
    %39 = vector.shape_cast %38 : vector<1x7x128xbf16> to vector<7x128xbf16>
    %c0_33 = arith.constant 0 : index
    %c0_34 = arith.constant 0 : index
    %c255 = arith.constant 255 : index
    %40 = vector.load %arg1[%c0_33, %c0_34, %c255] : memref<1x7x640xbf16, #tpu.memory_space<vmem>>, vector<1x7x128xbf16>
    %41 = vector.shape_cast %40 : vector<1x7x128xbf16> to vector<7x128xbf16>
    %c0_35 = arith.constant 0 : index
    %c0_36 = arith.constant 0 : index
    %c256 = arith.constant 256 : index
    %42 = vector.load %arg1[%c0_35, %c0_36, %c256] : memref<1x7x640xbf16, #tpu.memory_space<vmem>>, vector<1x7x128xbf16>
    %43 = vector.shape_cast %42 : vector<1x7x128xbf16> to vector<7x128xbf16>
    %c0_37 = arith.constant 0 : index
    %c0_38 = arith.constant 0 : index
    %c257 = arith.constant 257 : index
    %44 = vector.load %arg1[%c0_37, %c0_38, %c257] : memref<1x7x640xbf16, #tpu.memory_space<vmem>>, vector<1x7x128xbf16>
    %45 = vector.shape_cast %44 : vector<1x7x128xbf16> to vector<7x128xbf16>
    %c0_39 = arith.constant 0 : index
    %c0_40 = arith.constant 0 : index
    %c273 = arith.constant 273 : index
    %46 = vector.load %arg1[%c0_39, %c0_40, %c273] : memref<1x7x640xbf16, #tpu.memory_space<vmem>>, vector<1x7x128xbf16>
    %47 = vector.shape_cast %46 : vector<1x7x128xbf16> to vector<7x128xbf16>
    %c0_41 = arith.constant 0 : index
    %c0_42 = arith.constant 0 : index
    %c274 = arith.constant 274 : index
    %48 = vector.load %arg1[%c0_41, %c0_42, %c274] : memref<1x7x640xbf16, #tpu.memory_space<vmem>>, vector<1x7x128xbf16>
    %49 = vector.shape_cast %48 : vector<1x7x128xbf16> to vector<7x128xbf16>
    %c0_43 = arith.constant 0 : index
    %c0_44 = arith.constant 0 : index
    %c275 = arith.constant 275 : index
    %50 = vector.load %arg1[%c0_43, %c0_44, %c275] : memref<1x7x640xbf16, #tpu.memory_space<vmem>>, vector<1x7x128xbf16>
    %51 = vector.shape_cast %50 : vector<1x7x128xbf16> to vector<7x128xbf16>
    %cst_45 = arith.constant 0.000000e+00 : bf16
    %52 = vector.broadcast %cst_45 : bf16 to vector<1x128xbf16>
    %53 = tpu.concatenate %35, %37, %39, %41, %43, %45, %47, %49, %51, %52 in 0 : vector<7x128xbf16>, vector<7x128xbf16>, vector<7x128xbf16>, vector<7x128xbf16>, vector<7x128xbf16>, vector<7x128xbf16>, vector<7x128xbf16>, vector<7x128xbf16>, vector<7x128xbf16>, vector<1x128xbf16> -> vector<64x128xbf16>
    %cst_46 = arith.constant dense<0.000000e+00> : vector<64x128xf32>
    %54 = tpu.matmul %0, %53, %cst_46 {dimension_numbers = #tpu.dot_dimension_numbers<[1], [0], [0], [1], [0, 0, 1, 1], [], []>} : vector<64x64xbf16>, vector<64x128xbf16>, vector<64x128xf32> -> vector<64x128xf32>
    %55 = vector.broadcast %1 : vector<64x1xf32> to vector<64x128xf32>
    %56 = arith.addf %54, %55 : vector<64x128xf32>
    %cst_47 = arith.constant 0.000000e+00 : f32
    %57 = vector.broadcast %cst_47 : f32 to vector<64x128xf32>
    %58 = arith.maximumf %56, %57 : vector<64x128xf32>
    %c0_48 = arith.constant 0 : index
    %c128_49 = arith.constant 128 : index
    %59 = vector.load %arg4[%c0_48, %c128_49] : memref<1x384xf32, #tpu.memory_space<vmem>>, vector<1x128xf32>
    %60 = vector.broadcast %59 : vector<1x128xf32> to vector<64x128xf32>
    %61 = arith.mulf %58, %60 : vector<64x128xf32>
    %cst_50 = arith.constant dense<0.000000e+00> : vector<64xf32>
    %62 = vector.multi_reduction <add>, %61, %cst_50 [1] : vector<64x128xf32> to vector<64xf32>
    %63 = vector.shape_cast %62 : vector<64xf32> to vector<64x1xf32>
    %64 = arith.addf %33, %63 : vector<64x1xf32>
    %c0_51 = arith.constant 0 : index
    %c0_52 = arith.constant 0 : index
    %c365 = arith.constant 365 : index
    %65 = vector.load %arg1[%c0_51, %c0_52, %c365] : memref<1x7x640xbf16, #tpu.memory_space<vmem>>, vector<1x7x128xbf16>
    %66 = vector.shape_cast %65 : vector<1x7x128xbf16> to vector<7x128xbf16>
    %c0_53 = arith.constant 0 : index
    %c0_54 = arith.constant 0 : index
    %c366 = arith.constant 366 : index
    %67 = vector.load %arg1[%c0_53, %c0_54, %c366] : memref<1x7x640xbf16, #tpu.memory_space<vmem>>, vector<1x7x128xbf16>
    %68 = vector.shape_cast %67 : vector<1x7x128xbf16> to vector<7x128xbf16>
    %c0_55 = arith.constant 0 : index
    %c0_56 = arith.constant 0 : index
    %c367 = arith.constant 367 : index
    %69 = vector.load %arg1[%c0_55, %c0_56, %c367] : memref<1x7x640xbf16, #tpu.memory_space<vmem>>, vector<1x7x128xbf16>
    %70 = vector.shape_cast %69 : vector<1x7x128xbf16> to vector<7x128xbf16>
    %c0_57 = arith.constant 0 : index
    %c0_58 = arith.constant 0 : index
    %c383 = arith.constant 383 : index
    %71 = vector.load %arg1[%c0_57, %c0_58, %c383] : memref<1x7x640xbf16, #tpu.memory_space<vmem>>, vector<1x7x128xbf16>
    %72 = vector.shape_cast %71 : vector<1x7x128xbf16> to vector<7x128xbf16>
    %c0_59 = arith.constant 0 : index
    %c0_60 = arith.constant 0 : index
    %c384 = arith.constant 384 : index
    %73 = vector.load %arg1[%c0_59, %c0_60, %c384] : memref<1x7x640xbf16, #tpu.memory_space<vmem>>, vector<1x7x128xbf16>
    %74 = vector.shape_cast %73 : vector<1x7x128xbf16> to vector<7x128xbf16>
    %c0_61 = arith.constant 0 : index
    %c0_62 = arith.constant 0 : index
    %c385 = arith.constant 385 : index
    %75 = vector.load %arg1[%c0_61, %c0_62, %c385] : memref<1x7x640xbf16, #tpu.memory_space<vmem>>, vector<1x7x128xbf16>
    %76 = vector.shape_cast %75 : vector<1x7x128xbf16> to vector<7x128xbf16>
    %c0_63 = arith.constant 0 : index
    %c0_64 = arith.constant 0 : index
    %c401 = arith.constant 401 : index
    %77 = vector.load %arg1[%c0_63, %c0_64, %c401] : memref<1x7x640xbf16, #tpu.memory_space<vmem>>, vector<1x7x128xbf16>
    %78 = vector.shape_cast %77 : vector<1x7x128xbf16> to vector<7x128xbf16>
    %c0_65 = arith.constant 0 : index
    %c0_66 = arith.constant 0 : index
    %c402 = arith.constant 402 : index
    %79 = vector.load %arg1[%c0_65, %c0_66, %c402] : memref<1x7x640xbf16, #tpu.memory_space<vmem>>, vector<1x7x128xbf16>
    %80 = vector.shape_cast %79 : vector<1x7x128xbf16> to vector<7x128xbf16>
    %c0_67 = arith.constant 0 : index
    %c0_68 = arith.constant 0 : index
    %c403 = arith.constant 403 : index
    %81 = vector.load %arg1[%c0_67, %c0_68, %c403] : memref<1x7x640xbf16, #tpu.memory_space<vmem>>, vector<1x7x128xbf16>
    %82 = vector.shape_cast %81 : vector<1x7x128xbf16> to vector<7x128xbf16>
    %cst_69 = arith.constant 0.000000e+00 : bf16
    %83 = vector.broadcast %cst_69 : bf16 to vector<1x128xbf16>
    %84 = tpu.concatenate %66, %68, %70, %72, %74, %76, %78, %80, %82, %83 in 0 : vector<7x128xbf16>, vector<7x128xbf16>, vector<7x128xbf16>, vector<7x128xbf16>, vector<7x128xbf16>, vector<7x128xbf16>, vector<7x128xbf16>, vector<7x128xbf16>, vector<7x128xbf16>, vector<1x128xbf16> -> vector<64x128xbf16>
    %cst_70 = arith.constant dense<0.000000e+00> : vector<64x128xf32>
    %85 = tpu.matmul %0, %84, %cst_70 {dimension_numbers = #tpu.dot_dimension_numbers<[1], [0], [0], [1], [0, 0, 1, 1], [], []>} : vector<64x64xbf16>, vector<64x128xbf16>, vector<64x128xf32> -> vector<64x128xf32>
    %86 = vector.broadcast %1 : vector<64x1xf32> to vector<64x128xf32>
    %87 = arith.addf %85, %86 : vector<64x128xf32>
    %cst_71 = arith.constant 0.000000e+00 : f32
    %88 = vector.broadcast %cst_71 : f32 to vector<64x128xf32>
    %89 = arith.maximumf %87, %88 : vector<64x128xf32>
    %c0_72 = arith.constant 0 : index
    %c256_73 = arith.constant 256 : index
    %90 = vector.load %arg4[%c0_72, %c256_73] : memref<1x384xf32, #tpu.memory_space<vmem>>, vector<1x128xf32>
    %91 = vector.broadcast %90 : vector<1x128xf32> to vector<64x128xf32>
    %92 = arith.mulf %89, %91 : vector<64x128xf32>
    %cst_74 = arith.constant dense<0.000000e+00> : vector<64xf32>
    %93 = vector.multi_reduction <add>, %92, %cst_74 [1] : vector<64x128xf32> to vector<64xf32>
    %94 = vector.shape_cast %93 : vector<64xf32> to vector<64x1xf32>
    %95 = arith.addf %64, %94 : vector<64x1xf32>
    %cst_75 = arith.constant 3.906250e-03 : f32
    %96 = vector.broadcast %cst_75 : f32 to vector<64x1xf32>
    %97 = arith.mulf %95, %96 : vector<64x1xf32>
    %c0_76 = arith.constant 0 : index
    %c0_77 = arith.constant 0 : index
    %98 = vector.load %arg5[%c0_76, %c0_77] : memref<64x1xf32, #tpu.memory_space<vmem>>, vector<64x1xf32>
    %99 = arith.mulf %97, %98 : vector<64x1xf32>
    %100 = vector.shape_cast %99 : vector<64x1xf32> to vector<1x64x1xf32>
    %cst_78 = arith.constant dense<0.000000e+00> : vector<1xf32>
    %101 = vector.multi_reduction <add>, %100, %cst_78 [1, 2] : vector<1x64x1xf32> to vector<1xf32>
    %102 = vector.shape_cast %101 : vector<1xf32> to vector<1x1x1xf32>
    %103 = vector.extract %102[0, 0, 0] : f32 from vector<1x1x1xf32>
    %c0_79 = arith.constant 0 : index
    %c0_80 = arith.constant 0 : index
    %104 = memref.load %arg6[%c0_79, %c0_80] : memref<1x1xf32, #tpu.memory_space<smem>>
    %105 = arith.addf %103, %104 : f32
    %106 = vector.broadcast %105 : f32 to vector<1x8x128xf32>
    %c0_81 = arith.constant 0 : index
    %c0_82 = arith.constant 0 : index
    %c0_83 = arith.constant 0 : index
    %107 = vector.load %arg7[%c0_81, %c0_82, %c0_83] : memref<1x8x128xf32, #tpu.memory_space<vmem>>, vector<1x8x128xf32>
    tpu.vector_store %arg7[%c0_81, %c0_82, %c0_83], %106 {strides = array<i32>} : memref<1x8x128xf32, #tpu.memory_space<vmem>>, vector<1x8x128xf32>,
    return
  }
  func.func @transform_0(%arg0: i32) -> (i32, i32, i32) {
    %c0_i32 = arith.constant 0 : i32
    %c0_i32_0 = arith.constant 0 : i32
    %c0_i32_1 = arith.constant 0 : i32
    return %arg0, %c0_i32, %c0_i32_0 : i32, i32, i32
  }
  func.func @transform_1(%arg0: i32) -> (i32, i32) {
    %c0_i32 = arith.constant 0 : i32
    %c0_i32_0 = arith.constant 0 : i32
    %c0_i32_1 = arith.constant 0 : i32
    return %c0_i32, %c0_i32_0 : i32, i32
  }
  func.func @transform_2(%arg0: i32) -> (i32, i32) {
    %c0_i32 = arith.constant 0 : i32
    %c0_i32_0 = arith.constant 0 : i32
    %c0_i32_1 = arith.constant 0 : i32
    return %c0_i32, %c0_i32_0 : i32, i32
  }
  func.func @transform_3(%arg0: i32) -> (i32, i32) {
    %c0_i32 = arith.constant 0 : i32
    %c0_i32_0 = arith.constant 0 : i32
    %c0_i32_1 = arith.constant 0 : i32
    return %c0_i32, %c0_i32_0 : i32, i32
  }
  func.func @transform_4(%arg0: i32) -> (i32, i32) {
    %c0_i32 = arith.constant 0 : i32
    %c0_i32_0 = arith.constant 0 : i32
    %c0_i32_1 = arith.constant 0 : i32
    return %c0_i32, %c0_i32_0 : i32, i32
  }
  func.func @transform_5(%arg0: i32) -> (i32, i32) {
    %c0_i32 = arith.constant 0 : i32
    %c0_i32_0 = arith.constant 0 : i32
    %c0_i32_1 = arith.constant 0 : i32
    return %c0_i32, %c0_i32_0 : i32, i32
  }
  func.func @transform_6(%arg0: i32) -> (i32, i32, i32) {
    %c0_i32 = arith.constant 0 : i32
    %c0_i32_0 = arith.constant 0 : i32
    %c0_i32_1 = arith.constant 0 : i32
    return %arg0, %c0_i32, %c0_i32_0 : i32, i32, i32
  }
}

</mosaic_0001>

<llo_original>
// kernel: tpu_custom_call.1
$region0: #{tpu_custom_call.1}
  #allocation0 [shape = 'u32[]', space=smem, size = 0x4, offset = 0x4, fixed_abs, tag = 'smem constant byte address 0x4 - core index']
  #allocation1 [shape = 'u32[144,128]{1,0:T(1,128)}', space=vmem, size = 0x12000, scoped, tag = 'internal scratch']
  #allocation2 [shape = 'f32[1,1]{1,0:T(1,128)S(6)}', space=smem, size = 0x200, scoped, tag = 'scoped memory for tpu_custom_call.1']
  %s0 = inlined_call_operand.vmem [shape: bf16[2,7,640], index: 0, kind: input, shape index: {}]
  %s1 = inlined_call_operand.vmem [shape: bf16[64,64], index: 1, kind: input, shape index: {}]
  %s2 = inlined_call_operand.vmem [shape: f32[64,1], index: 2, kind: input, shape index: {}]
  %s3 = inlined_call_operand.vmem [shape: f32[1,384], index: 3, kind: input, shape index: {}]
  %s4 = inlined_call_operand.vmem [shape: f32[64,1], index: 4, kind: input, shape index: {}]
  %s5 = inlined_call_operand.<no memory space> [shape: f32[1,1], index: 5, kind: input, shape index: {}]
  %s6 = inlined_call_operand.hbm [shape: f32[2,8,128], index: 6, kind: output, shape index: {}]
  %s7 = sld [smem:[#allocation0]]
  $region57: #{tpu_custom_call.1} parent=0
    _
  %s9 = ssub.s32 1, %s7
  %s10 = scalar_select 0, %s9, %s7
  %11 = sst [smem:[#allocation2]] %s5
  $region1: #{tpu_custom_call.1} parent=0
    #allocation3 [shape = 'u8[8192]{0}', space=vmem, size = 0x2000, scoped, tag = 'output window, operand 0']
    #allocation4 [shape = 's32[2]{0}', space=sflag, size = 0x8, scoped, tag = 'scoped memory for tpu_custom_call.1']
    %12 = vsyncpa [#allocation4], 0
    %s13 = scalar_lea.sflag [#allocation4], 1
    %14 = vsyncpa %s13, 0
    loop: start=0, step=1, limit=4
    $region2: #{tpu_custom_call.1} parent=1 // loop_pre_header
      _
    $region3: #{tpu_custom_call.1} parent=1 // loop_header
      %s16 = sphi 0, %s20
      %p17 = scmp.ge.s32.totalorder %s16, 4
      %s26 = sphi 0, %s28
      %s29 = sphi 0, %s26
      %s30 = sphi 0, %s29
      %s46 = sphi 0, %s30
      %s50 = sphi 0, %s50
      %s52 = sphi 0, %s50
      %s53 = sphi 0, %s52
      %s67 = sphi 0, %s53
      %s71 = sphi 0, %s71
      %s73 = sphi 0, %s71
      %s74 = sphi 0, %s73
      %s88 = sphi 0, %s74
      %s92 = sphi 0, %s92
      %s94 = sphi 0, %s92
      %s95 = sphi 0, %s94
      %s109 = sphi 0, %s95
      %s113 = sphi 0, %s113
      %s115 = sphi 0, %s113
      %s116 = sphi 0, %s115
      %s130 = sphi 0, %s116
      %s134 = sphi 0, %s134
      %s136 = sphi 0, %s134
      %s137 = sphi 0, %s136
      %s151 = sphi 0, %s137
      %s157 = sphi 0, %s159
      %s160 = sphi 0, %s157
      %s161 = sphi 0, %s160
      %s177 = sphi 0, %s161
    $region4: #{tpu_custom_call.1} parent=1 // loop_header_branch
      %19 = sbr.rel (%p17) target = $region8
    $region5: #{tpu_custom_call.1} parent=1 // loop_body
      %s21 = ssub.s32 %s16, 1
      %s22 = ssub.s32 %s16, 2
      %s23 = sadd.s32 %s16, 1
      %s24 = ssub.s32 %s16, %s23
      %p25 = scmp.eq.s32.totalorder %s24, 0
      %s27 = sadd.s32 %s26, 1
      %s28 = scalar_select %p25, %s26, %s27
      %p31 = pneg %p25
      %p32 = scmp.eq.s32.totalorder %s16, 1
      %p33 = por %p31, %p32
      %p34 = scmp.ne.s32.totalorder %s26, %s29
      %p35 = scmp.eq.s32.totalorder %s16, 0
      %p36 = por %p34, %p35
      %p37 = scmp.ne.s32.totalorder %s26, %s29
      %p38 = scmp.eq.s32.totalorder %s21, 1
      %p39 = por %p37, %p38
      %p40 = scmp.ne.s32.totalorder %s29, %s30
      %p41 = scmp.eq.s32.totalorder %s21, 0
      %p42 = por %p40, %p41
      %p43 = scmp.ne.s32.totalorder %s29, %s30
      %p44 = scmp.eq.s32.totalorder %s22, 1
      %p45 = por %p43, %p44
      %p47 = scmp.ne.s32.totalorder %s30, %s46
      %p48 = scmp.eq.s32.totalorder %s22, 0
      %p49 = por %p47, %p48
      %s51 = sadd.s32 %s50, 1
      %p54 = scmp.eq.s32.totalorder %s16, 1
      %p55 = scmp.ne.s32.totalorder %s50, %s52
      %p56 = scmp.eq.s32.totalorder %s16, 0
      %p57 = por %p55, %p56
      %p58 = scmp.ne.s32.totalorder %s50, %s52
      %p59 = scmp.eq.s32.totalorder %s21, 1
      %p60 = por %p58, %p59
      %p61 = scmp.ne.s32.totalorder %s52, %s53
      %p62 = scmp.eq.s32.totalorder %s21, 0
      %p63 = por %p61, %p62
      %p64 = scmp.ne.s32.totalorder %s52, %s53
      %p65 = scmp.eq.s32.totalorder %s22, 1
      %p66 = por %p64, %p65
      %p68 = scmp.ne.s32.totalorder %s53, %s67
      %p69 = scmp.eq.s32.totalorder %s22, 0
      %p70 = por %p68, %p69
      %s72 = sadd.s32 %s71, 1
      %p75 = scmp.eq.s32.totalorder %s16, 1
      %p76 = scmp.ne.s32.totalorder %s71, %s73
      %p77 = scmp.eq.s32.totalorder %s16, 0
      %p78 = por %p76, %p77
      %p79 = scmp.ne.s32.totalorder %s71, %s73
      %p80 = scmp.eq.s32.totalorder %s21, 1
      %p81 = por %p79, %p80
      %p82 = scmp.ne.s32.totalorder %s73, %s74
      %p83 = scmp.eq.s32.totalorder %s21, 0
      %p84 = por %p82, %p83
      %p85 = scmp.ne.s32.totalorder %s73, %s74
      %p86 = scmp.eq.s32.totalorder %s22, 1
      %p87 = por %p85, %p86
      %p89 = scmp.ne.s32.totalorder %s74, %s88
      %p90 = scmp.eq.s32.totalorder %s22, 0
      %p91 = por %p89, %p90
      %s93 = sadd.s32 %s92, 1
      %p96 = scmp.eq.s32.totalorder %s16, 1
      %p97 = scmp.ne.s32.totalorder %s92, %s94
      %p98 = scmp.eq.s32.totalorder %s16, 0
      %p99 = por %p97, %p98
      %p100 = scmp.ne.s32.totalorder %s92, %s94
      %p101 = scmp.eq.s32.totalorder %s21, 1
      %p102 = por %p100, %p101
      %p103 = scmp.ne.s32.totalorder %s94, %s95
      %p104 = scmp.eq.s32.totalorder %s21, 0
      %p105 = por %p103, %p104
      %p106 = scmp.ne.s32.totalorder %s94, %s95
      %p107 = scmp.eq.s32.totalorder %s22, 1
      %p108 = por %p106, %p107
      %p110 = scmp.ne.s32.totalorder %s95, %s109
      %p111 = scmp.eq.s32.totalorder %s22, 0
      %p112 = por %p110, %p111
      %s114 = sadd.s32 %s113, 1
      %p117 = scmp.eq.s32.totalorder %s16, 1
      %p118 = scmp.ne.s32.totalorder %s113, %s115
      %p119 = scmp.eq.s32.totalorder %s16, 0
      %p120 = por %p118, %p119
      %p121 = scmp.ne.s32.totalorder %s113, %s115
      %p122 = scmp.eq.s32.totalorder %s21, 1
      %p123 = por %p121, %p122
      %p124 = scmp.ne.s32.totalorder %s115, %s116
      %p125 = scmp.eq.s32.totalorder %s21, 0
      %p126 = por %p124, %p125
      %p127 = scmp.ne.s32.totalorder %s115, %s116
      %p128 = scmp.eq.s32.totalorder %s22, 1
      %p129 = por %p127, %p128
      %p131 = scmp.ne.s32.totalorder %s116, %s130
      %p132 = scmp.eq.s32.totalorder %s22, 0
      %p133 = por %p131, %p132
      %s135 = sadd.s32 %s134, 1
      %p138 = scmp.eq.s32.totalorder %s16, 1
      %p139 = scmp.ne.s32.totalorder %s134, %s136
      %p140 = scmp.eq.s32.totalorder %s16, 0
      %p141 = por %p139, %p140
      %p142 = scmp.ne.s32.totalorder %s134, %s136
      %p143 = scmp.eq.s32.totalorder %s21, 1
      %p144 = por %p142, %p143
      %p145 = scmp.ne.s32.totalorder %s136, %s137
      %p146 = scmp.eq.s32.totalorder %s21, 0
      %p147 = por %p145, %p146
      %p148 = scmp.ne.s32.totalorder %s136, %s137
      %p149 = scmp.eq.s32.totalorder %s22, 1
      %p150 = por %p148, %p149
      %p152 = scmp.ne.s32.totalorder %s137, %s151
      %p153 = scmp.eq.s32.totalorder %s22, 0
      %p154 = por %p152, %p153
      %s155 = ssub.s32 %s16, %s23
      %p156 = scmp.eq.s32.totalorder %s155, 0
      %s158 = sadd.s32 %s157, 1
      %s159 = scalar_select %p156, %s157, %s158
      %p162 = pneg %p156
      %p163 = scmp.eq.s32.totalorder %s16, 1
      %p164 = por %p162, %p163
      %p165 = scmp.ne.s32.totalorder %s157, %s160
      %p166 = scmp.eq.s32.totalorder %s16, 0
      %p167 = por %p165, %p166
      %p168 = scmp.ne.s32.totalorder %s157, %s160
      %p169 = scmp.eq.s32.totalorder %s21, 1
      %p170 = por %p168, %p169
      %p171 = scmp.ne.s32.totalorder %s160, %s161
      %p172 = scmp.eq.s32.totalorder %s21, 0
      %p173 = por %p171, %p172
      %p174 = scmp.ne.s32.totalorder %s160, %s161
      %p175 = scmp.eq.s32.totalorder %s22, 1
      %p176 = por %p174, %p175
      %p178 = scmp.ne.s32.totalorder %s161, %s177
      %p179 = scmp.eq.s32.totalorder %s22, 0
      %p180 = por %p178, %p179
      %p181 = scmp.le.s32.totalorder 1, %s16
      %p182 = scmp.lt.s32.totalorder %s16, 3
      %p183 = pnand %p181, %p182
      %p184 = pneg %p183
      // Predicated region
      $region9: #{tpu_custom_call.1} parent=5 // pred_check
        _
      $region10: #{tpu_custom_call.1} parent=5 // pred_check_branch
        %186 = sbr.rel (%p183) target = $region12
      $region11: #{tpu_custom_call.1} parent=5 // pred_region
        %s187 = ssub.s32 %s16, 1
        // Predicated region
        $region13: #{tpu_custom_call.1} parent=11 // pred_check
          %p188 = pneg %p63
        $region14: #{tpu_custom_call.1} parent=11 // pred_check_branch
          %190 = sbr.rel (%p188) target = $region16
        $region15: #{tpu_custom_call.1} parent=11 // pred_region
          _
        $region16: #{tpu_custom_call.1} parent=11 // pred_fallthru
          _
        // Predicated region
        $region17: #{tpu_custom_call.1} parent=11 // pred_check
          %p191 = pneg %p84
        $region18: #{tpu_custom_call.1} parent=11 // pred_check_branch
          %193 = sbr.rel (%p191) target = $region20
        $region19: #{tpu_custom_call.1} parent=11 // pred_region
          _
        $region20: #{tpu_custom_call.1} parent=11 // pred_fallthru
          _
        // Predicated region
        $region21: #{tpu_custom_call.1} parent=11 // pred_check
          %p194 = pneg %p105
        $region22: #{tpu_custom_call.1} parent=11 // pred_check_branch
          %196 = sbr.rel (%p194) target = $region24
        $region23: #{tpu_custom_call.1} parent=11 // pred_region
          _
        $region24: #{tpu_custom_call.1} parent=11 // pred_fallthru
          _
        // Predicated region
        $region25: #{tpu_custom_call.1} parent=11 // pred_check
          %p197 = pneg %p126
        $region26: #{tpu_custom_call.1} parent=11 // pred_check_branch
          %199 = sbr.rel (%p197) target = $region28
        $region27: #{tpu_custom_call.1} parent=11 // pred_region
          _
        $region28: #{tpu_custom_call.1} parent=11 // pred_fallthru
          _
        // Predicated region
        $region29: #{tpu_custom_call.1} parent=11 // pred_check
          %p200 = pneg %p147
        $region30: #{tpu_custom_call.1} parent=11 // pred_check_branch
          %202 = sbr.rel (%p200) target = $region32
        $region31: #{tpu_custom_call.1} parent=11 // pred_region
          _
        $region32: #{tpu_custom_call.1} parent=11 // pred_fallthru
          _
      $region12: #{tpu_custom_call.1} parent=5 // pred_fallthru
        _
      %p203 = scmp.lt.s32.totalorder %s16, 2
      // Predicated region
      $region33: #{tpu_custom_call.1} parent=5 // pred_check
        %p204 = pneg %p203
      $region34: #{tpu_custom_call.1} parent=5 // pred_check_branch
        %206 = sbr.rel (%p204) target = $region36
      $region35: #{tpu_custom_call.1} parent=5 // pred_region
        // Predicated region
        $region37: #{tpu_custom_call.1} parent=35 // pred_check
          %p207 = pneg %p36
        $region38: #{tpu_custom_call.1} parent=35 // pred_check_branch
          %209 = sbr.rel (%p207) target = $region40
        $region39: #{tpu_custom_call.1} parent=35 // pred_region
          %p210 = scmp.lt.s32.totalorder %s16, 1
          %s211 = scalar_select %p210, %s16, 1
          %s212 = smul.addr %s211, 5
          %s213 = smul.addr %s212, 4
          %s214 = scalar_lea.vmem %s0, %s213
        $region40: #{tpu_custom_call.1} parent=35 // pred_fallthru
          _
      $region36: #{tpu_custom_call.1} parent=5 // pred_fallthru
        _
      %p215 = scmp.le.s32.totalorder 1, %s16
      %p216 = scmp.lt.s32.totalorder %s16, 3
      %p217 = pnand %p215, %p216
      %p218 = pneg %p217
      // Predicated region
      $region41: #{tpu_custom_call.1} parent=5 // pred_check
        _
      $region42: #{tpu_custom_call.1} parent=5 // pred_check_branch
        %220 = sbr.rel (%p217) target = $region44
      $region43: #{tpu_custom_call.1} parent=5 // pred_region
        %s221 = ssub.s32 %s16, 1
        %p222 = scmp.lt.s32.totalorder %s21, 1
        %s223 = scalar_select %p222, %s21, 1
        %s224 = smul.addr %s223, 5
        %s225 = smul.addr %s224, 4
        %s226 = scalar_lea.vmem %s0, %s225
        %p227 = pneg %p42
        %p228 = pneg %p39
        %p229 = pneg %p63
        %p230 = pneg %p60
        %p231 = pneg %p84
        %p232 = pneg %p81
        %p233 = pneg %p105
        %p234 = pneg %p102
        %p235 = pneg %p126
        %p236 = pneg %p123
        %p237 = pneg %p147
        %p238 = pneg %p144
        %p239 = pneg %p173
        %p240 = pneg %p170
        %s241 = sand.u32 %s160, 1
        %s242 = scalar_lea.sflag [#allocation4], %s241
        %s243 = sand.u32 %s160, 1
        %s244 = smul.addr %s243, 8
        %s245 = scalar_lea.vmem [#allocation3], %s244
        %p246 = scmp.lt.s32.totalorder %s21, 1
        %s247 = scalar_select %p246, %s21, 1
        %s248 = smul.addr %s247, 5
        %s249 = smul.addr %s248, 4
        %s250 = scalar_lea.vmem %s0, %s249
        %v252 = vld [vmem:[%s1] sm:$0xf]
        %v253 = vld [vmem:[%s1 + $0x4] sm:$0xf]
        %v254 = vld [vmem:[%s1 + $0x8] sm:$0xf]
        %v255 = vld [vmem:[%s1 + $0xc] sm:$0xf]
        %v256 = vld [vmem:[%s1 + $0x10] sm:$0xf]
        %v257 = vld [vmem:[%s1 + $0x14] sm:$0xf]
        %v258 = vld [vmem:[%s1 + $0x18] sm:$0xf]
        %v259 = vld [vmem:[%s1 + $0x1c] sm:$0xf]
        %v260 = vld [vmem:[%s2] sm:$0xff]
        %v261 = vld [vmem:[%s2 + $0x8] sm:$0xff]
        %v262 = vld [vmem:[%s2 + $0x10] sm:$0xff]
        %v263 = vld [vmem:[%s2 + $0x18] sm:$0xff]
        %v264 = vld [vmem:[%s2 + $0x20] sm:$0xff]
        %v265 = vld [vmem:[%s2 + $0x28] sm:$0xff]
        %v266 = vld [vmem:[%s2 + $0x30] sm:$0xff]
        %v267 = vld [vmem:[%s2 + $0x38] sm:$0xff]
        %v268 = vld [vmem:[%s250] sm:$0xff]
        %v269 = vld [vmem:[%s250 + $0x4] sm:$0xf]
        %v270 = vld [vmem:[%s250 + $0x4] sm:$0xff]
        %v272 = vunpack.c.l.b16 %v268
        %v273 = vunpack.c.h.b16 %v268
        %v274 = vpack.c.b16 %v272, %v272
        %v275 = vpack.c.b16 %v273, %v273
        %v279 = vshrl.u32 %v274, 16
        %v281 = vrot.slane %v279, 4
        %v282 = vshll.u32 %v274, 16
        %v284 = vrot.slane %v282, 5
        %v285 = vor.u32 %v281, %v284
        %v287 = vshrl.u32 %v275, 16
        %v289 = vrot.slane %v287, 4
        %v290 = vshll.u32 %v275, 16
        %v292 = vrot.slane %v290, 5
        %v293 = vor.u32 %v289, %v292
        %294 = vrot.lane.b32.xlu0 %v285, 127
        %v295 = vpop.permute.xlu0 %294
        %296 = vrot.lane.b32.xlu0 %v293, 127
        %v297 = vpop.permute.xlu0 %296
        %vm298 = vcmask 1039360
        %v299 = vsel %vm298, %v295, %v297
        %v302 = vrot.slane %v274, 1
        %v303 = vrot.slane %v275, 1
        %304 = vrot.lane.b32.xlu0 %v302, 126
        %v305 = vpop.permute.xlu0 %304
        %306 = vrot.lane.b32.xlu0 %v303, 126
        %v307 = vpop.permute.xlu0 %306
        %vm308 = vcmask 1031168
        %v309 = vsel %vm308, %v305, %v307
        %v312 = vrot.slane %v279, 5
        %v313 = vrot.slane %v282, 6
        %v314 = vor.u32 %v312, %v313
        %v315 = vrot.slane %v287, 5
        %v316 = vrot.slane %v290, 6
        %v317 = vor.u32 %v315, %v316
        %318 = vrot.lane.b32.xlu0 %v314, 110
        %v319 = vpop.permute.xlu0 %318
        %320 = vrot.lane.b32.xlu0 %v317, 110
        %v321 = vpop.permute.xlu0 %320
        %vm322 = vcmask 900096
        %v323 = vsel %vm322, %v319, %v321
        %v327 = vunpack.c.l.b16 %v269
        %v328 = vpack.c.b16 %v327, %v327
        %v329 = vrot.slane %v328, 2
        %330 = vrot.lane.b32.xlu0 %v329, 109
        %v331 = vpop.permute.xlu0 %330
        %v334 = vunpack.c.l.b16 %v270
        %v335 = vunpack.c.h.b16 %v270
        %v336 = vpack.c.b16 %v334, %v334
        %v337 = vpack.c.b16 %v335, %v335
        %v339 = vshrl.u32 %v336, 16
        %v341 = vrot.slane %v339, 6
        %v342 = vshll.u32 %v336, 16
        %v344 = vrot.slane %v342, 7
        %v345 = vor.u32 %v341, %v344
        %v347 = vshrl.u32 %v337, 16
        %v349 = vrot.slane %v347, 6
        %v350 = vshll.u32 %v337, 16
        %v352 = vrot.slane %v350, 7
        %v353 = vor.u32 %v349, %v352
        %354 = vrot.lane.b32.xlu0 %v345, 108
        %v355 = vpop.permute.xlu0 %354
        %356 = vrot.lane.b32.xlu0 %v353, 108
        %v357 = vpop.permute.xlu0 %356
        %vm358 = vcmask 883712
        %v359 = vsel %vm358, %v355, %v357
        %v362 = vrot.slane %v336, 3
        %v363 = vrot.slane %v337, 3
        %364 = vrot.lane.b32.xlu0 %v362, 92
        %v365 = vpop.permute.xlu0 %364
        %366 = vrot.lane.b32.xlu0 %v363, 92
        %v367 = vpop.permute.xlu0 %366
        %vm368 = vcmask 752640
        %v369 = vsel %vm368, %v365, %v367
        %v372 = vrot.slane %v339, 7
        %v373 = vor.u32 %v372, %v342
        %v374 = vrot.slane %v347, 7
        %v375 = vor.u32 %v374, %v350
        %376 = vrot.lane.b32.xlu0 %v373, 91
        %v377 = vpop.permute.xlu0 %376
        %378 = vrot.lane.b32.xlu0 %v375, 91
        %v379 = vpop.permute.xlu0 %378
        %vm380 = vcmask 744448
        %v381 = vsel %vm380, %v377, %v379
        %384 = vrot.lane.b32.xlu0 %v336, 90
        %v385 = vpop.permute.xlu0 %384
        %386 = vrot.lane.b32.xlu0 %v337, 90
        %v387 = vpop.permute.xlu0 %386
        %vm388 = vcmask 736256
        %v389 = vsel %vm388, %v385, %v387
        %vm390 = vcmask 1043456
        %vm391 = vsmask.f32 3328
        %vm392 = vmand %vm390, %vm391
        %v393 = vsel %vm392, %v274, %v299
        %v394 = vsel %vm392, %v275, %v297
        %vm395 = vcmask 1046528
        %v398 = vsel %vm395, %v393, %v309
        %v401 = vsel %vm395, %v394, %v307
        %vm402 = vcmask 1042432
        %vm403 = vsmask.f32 2304
        %vm404 = vmand %vm402, %vm403
        %v405 = vsel %vm404, %v309, %v323
        %v406 = vsel %vm404, %v307, %v321
        %vm407 = vcmask 1045504
        %v410 = vsel %vm407, %v405, %v331
        %v412 = vsel %vm407, %v406, %v331
        %vm413 = vcmask 1041408
        %vm414 = vsmask.f32 1280
        %vm415 = vmand %vm413, %vm414
        %v416 = vsel %vm415, %v331, %v355
        %v417 = vsel %vm415, %v331, %v359
        %vm418 = vcmask 1044480
        %v421 = vsel %vm418, %v416, %v365
        %v424 = vsel %vm418, %v417, %v369
        %vm425 = vcmask 1040384
        %vm426 = vsmask.f32 256
        %vm427 = vmand %vm425, %vm426
        %v428 = vsel %vm427, %v365, %v377
        %v429 = vsel %vm427, %v369, %v381
        %vm430 = vcmask 1043456
        %v433 = vsel %vm430, %v428, %v385
        %v437 = vsel %vm430, %v429, %v389
        %vm439 = vcmask 1047552
        %vm440 = vsmask.f32 7424
        %vm441 = vmand %vm439, %vm440
        %v442 = vsel %vm441, %v433, 0
        %v443 = vsel %vm441, %v437, 0
        %445 = vset.pattern.permute.xlu0 0
        %446 = vperm.xlu0 %445, %v260
        %v447 = vpop.permute.xlu0 %446
        %450 = vset.pattern.permute.xlu0 0
        %451 = vperm.xlu0 %450, %v261
        %v452 = vpop.permute.xlu0 %451
        %455 = vset.pattern.permute.xlu0 0
        %456 = vperm.xlu0 %455, %v262
        %v457 = vpop.permute.xlu0 %456
        %460 = vset.pattern.permute.xlu0 0
        %461 = vperm.xlu0 %460, %v263
        %v462 = vpop.permute.xlu0 %461
        %465 = vset.pattern.permute.xlu0 0
        %466 = vperm.xlu0 %465, %v264
        %v467 = vpop.permute.xlu0 %466
        %470 = vset.pattern.permute.xlu0 0
        %471 = vperm.xlu0 %470, %v265
        %v472 = vpop.permute.xlu0 %471
        %475 = vset.pattern.permute.xlu0 0
        %476 = vperm.xlu0 %475, %v266
        %v477 = vpop.permute.xlu0 %476
        %480 = vset.pattern.permute.xlu0 0
        %481 = vperm.xlu0 %480, %v267
        %v482 = vpop.permute.xlu0 %481
        %v492 = vunpack.c.l.b16 %v252
        %v493 = vunpack.c.l.b16 %v253
        %v494 = vunpack.c.l.b16 %v254
        %v495 = vunpack.c.l.b16 %v255
        %v496 = vunpack.c.l.b16 %v256
        %v497 = vunpack.c.l.b16 %v257
        %v498 = vunpack.c.l.b16 %v258
        %v499 = vunpack.c.l.b16 %v259
        %v500 = vpack.c.b16 %v493, %v492
        %v501 = vpack.c.b16 %v495, %v494
        %v502 = vpack.c.b16 %v497, %v496
        %v503 = vpack.c.b16 %v499, %v498
        %512 = vrot.lane.b32.xlu0 %v398, 19
        %v513 = vpop.permute.xlu0 %512
        %514 = vrot.lane.b32.xlu0 %v401, 19
        %v515 = vpop.permute.xlu0 %514
        %516 = vrot.lane.b32.xlu0 %v410, 19
        %v517 = vpop.permute.xlu0 %516
        %518 = vrot.lane.b32.xlu0 %v412, 19
        %v519 = vpop.permute.xlu0 %518
        %520 = vrot.lane.b32.xlu0 %v421, 19
        %v521 = vpop.permute.xlu0 %520
        %522 = vrot.lane.b32.xlu0 %v424, 19
        %v523 = vpop.permute.xlu0 %522
        %524 = vrot.lane.b32.xlu0 %v442, 19
        %v525 = vpop.permute.xlu0 %524
        %526 = vrot.lane.b32.xlu0 %v443, 19
        %v527 = vpop.permute.xlu0 %526
        %vm528 = vcmask 154624
        %v529 = vsel %vm528, %v513, %v515
        %v530 = vsel %vm528, %v517, %v519
        %v531 = vsel %vm528, %v521, %v523
        %v532 = vsel %vm528, %v525, %v527
        %vm537 = vcmask 523264
        %v539 = vsel %vm537, %v500, 0
        %v542 = vsel %vm537, %v501, 0
        %v545 = vsel %vm537, %v502, 0
        %v548 = vsel %vm537, %v503, 0
        %550 = vmatprep.subr.bf16.mxu0 0
        %551 = vmatpush1.bf16.msra.mxu0 0
        %552 = vmatprep.subr.bf16.mxu0 0
        %553 = vmatpush1.bf16.msra.mxu0 0
        %554 = vmatprep.subr.bf16.mxu0 0
        %555 = vmatpush1.bf16.msra.mxu0 0
        %556 = vmatprep.subr.bf16.mxu0 0
        %557 = vmatpush1.bf16.msra.mxu0 0
        %558 = vmatprep.subr.bf16.mxu0 0
        %559 = vmatpush1.bf16.msra.mxu0 %v532
        %560 = vmatprep.subr.bf16.mxu0 0
        %561 = vmatpush1.bf16.msra.mxu0 %v531
        %562 = vmatprep.subr.bf16.mxu0 0
        %563 = vmatpush1.bf16.msra.mxu0 %v530
        %564 = vmatprep.subr.bf16.mxu0 0
        %565 = vmatpush1.bf16.msra.mxu0 %v529
        %566 = vmatprep.subr.bf16.mxu0 0
        %567 = vmatpush2.bf16.msra.mxu0 0
        %568 = vmatprep.subr.bf16.mxu0 0
        %569 = vmatpush2.bf16.msra.mxu0 0
        %570 = vmatprep.subr.bf16.mxu0 0
        %571 = vmatpush2.bf16.msra.mxu0 0
        %572 = vmatprep.subr.bf16.mxu0 0
        %573 = vmatpush2.bf16.msra.mxu0 0
        %574 = vmatprep.subr.bf16.mxu0 0
        %575 = vmatpush2.bf16.msra.mxu0 0
        %576 = vmatprep.subr.bf16.mxu0 0
        %577 = vmatpush2.bf16.msra.mxu0 0
        %578 = vmatprep.subr.bf16.mxu0 0
        %579 = vmatpush2.bf16.msra.mxu0 0
        %580 = vmatprep.subr.bf16.mxu0 0
        %581 = vmatpush2.bf16.msra.mxu0 0
        %582 = vmatprep.mubr.bf16.mxu0 0
        %583 = vmatmul.mubr.bf16.gmra.mxu0 %v539
        %v584 = vpop.f32.mrf.mxu0
        %v585 = vadd.f32 %v447, %v584
        %v586 = vpop.f32.mrf.mxu0
        %v587 = vpop.f32.mrf.mxu0
        %v588 = vadd.f32 %v452, %v587
        %v589 = vpop.f32.mrf.mxu0
        %590 = vmatprep.mubr.bf16.mxu0 0
        %591 = vmatmul.mubr.bf16.gmra.mxu0 %v542
        %v592 = vpop.f32.mrf.mxu0
        %v593 = vadd.f32 %v457, %v592
        %v594 = vpop.f32.mrf.mxu0
        %v595 = vpop.f32.mrf.mxu0
        %v596 = vadd.f32 %v462, %v595
        %v597 = vpop.f32.mrf.mxu0
        %598 = vmatprep.mubr.bf16.mxu0 0
        %599 = vmatmul.mubr.bf16.gmra.mxu0 %v545
        %v600 = vpop.f32.mrf.mxu0
        %v601 = vadd.f32 %v467, %v600
        %v602 = vpop.f32.mrf.mxu0
        %v603 = vpop.f32.mrf.mxu0
        %v604 = vadd.f32 %v472, %v603
        %v605 = vpop.f32.mrf.mxu0
        %606 = vmatprep.mubr.bf16.mxu0 0
        %607 = vmatmul.mubr.bf16.gmra.mxu0 %v548
        %v608 = vpop.f32.mrf.mxu0
        %v609 = vadd.f32 %v477, %v608
        %v610 = vpop.f32.mrf.mxu0
        %v611 = vpop.f32.mrf.mxu0
        %v612 = vadd.f32 %v482, %v611
        %v613 = vpop.f32.mrf.mxu0
        %614 = vdwg.mxu0
        %v615 = vmax.f32 %v585, 0.0
        %v616 = vmax.f32 %v588, 0.0
        %v617 = vmax.f32 %v593, 0.0
        %v618 = vmax.f32 %v596, 0.0
        %v619 = vmax.f32 %v601, 0.0
        %v620 = vmax.f32 %v604, 0.0
        %v621 = vmax.f32 %v609, 0.0
        %v622 = vmax.f32 %v612, 0.0
        %v623 = vld [vmem:[%s3] sm:$0x1]
        %v625 = vlaneseq
        %v626 = vshrl.u32 %v625, 7
        %v627 = vsub.s32 0, %v626
        %v628 = vrot.slane %v623, %v627
        %v630 = vmul.f32 %v615, %v628
        %v631 = vmul.f32 %v616, %v628
        %v632 = vmul.f32 %v617, %v628
        %v633 = vmul.f32 %v618, %v628
        %v634 = vmul.f32 %v619, %v628
        %v635 = vmul.f32 %v620, %v628
        %v636 = vmul.f32 %v621, %v628
        %v637 = vmul.f32 %v622, %v628
        %638 = vadd.xlane.f32.xlu0 %v630
        %v639 = vpop.xlane.xlu0 %638
        %640 = vadd.xlane.f32.xlu0 %v631
        %v641 = vpop.xlane.xlu0 %640
        %642 = vadd.xlane.f32.xlu0 %v632
        %v643 = vpop.xlane.xlu0 %642
        %644 = vadd.xlane.f32.xlu0 %v633
        %v645 = vpop.xlane.xlu0 %644
        %646 = vadd.xlane.f32.xlu0 %v634
        %v647 = vpop.xlane.xlu0 %646
        %648 = vadd.xlane.f32.xlu0 %v635
        %v649 = vpop.xlane.xlu0 %648
        %650 = vadd.xlane.f32.xlu0 %v636
        %v651 = vpop.xlane.xlu0 %650
        %652 = vadd.xlane.f32.xlu0 %v637
        %v653 = vpop.xlane.xlu0 %652
        %v654 = vadd.f32 %v639, 0.0
        %v655 = vadd.f32 %v641, 0.0
        %v656 = vadd.f32 %v643, 0.0
        %v657 = vadd.f32 %v645, 0.0
        %v658 = vadd.f32 %v647, 0.0
        %v659 = vadd.f32 %v649, 0.0
        %v660 = vadd.f32 %v651, 0.0
        %v661 = vadd.f32 %v653, 0.0
        %v662 = vld [vmem:[%s250 + $0x8] sm:$0xf]
        %v663 = vld [vmem:[%s250 + $0x8] sm:$0xff]
        %v666 = vrot.slane %v339, 4
        %v667 = vrot.slane %v342, 5
        %v668 = vor.u32 %v666, %v667
        %v669 = vrot.slane %v347, 4
        %v670 = vrot.slane %v350, 5
        %v671 = vor.u32 %v669, %v670
        %672 = vrot.lane.b32.xlu0 %v668, 127
        %v673 = vpop.permute.xlu0 %672
        %674 = vrot.lane.b32.xlu0 %v671, 127
        %v675 = vpop.permute.xlu0 %674
        %v676 = vsel %vm298, %v673, %v675
        %v679 = vrot.slane %v336, 1
        %v680 = vrot.slane %v337, 1
        %681 = vrot.lane.b32.xlu0 %v679, 126
        %v682 = vpop.permute.xlu0 %681
        %683 = vrot.lane.b32.xlu0 %v680, 126
        %v684 = vpop.permute.xlu0 %683
        %v685 = vsel %vm308, %v682, %v684
        %v688 = vrot.slane %v339, 5
        %v689 = vrot.slane %v342, 6
        %v690 = vor.u32 %v688, %v689
        %v691 = vrot.slane %v347, 5
        %v692 = vrot.slane %v350, 6
        %v693 = vor.u32 %v691, %v692
        %694 = vrot.lane.b32.xlu0 %v690, 110
        %v695 = vpop.permute.xlu0 %694
        %696 = vrot.lane.b32.xlu0 %v693, 110
        %v697 = vpop.permute.xlu0 %696
        %v698 = vsel %vm322, %v695, %v697
        %v702 = vunpack.c.l.b16 %v662
        %v703 = vpack.c.b16 %v702, %v702
        %v704 = vrot.slane %v703, 2
        %705 = vrot.lane.b32.xlu0 %v704, 109
        %v706 = vpop.permute.xlu0 %705
        %v709 = vunpack.c.l.b16 %v663
        %v710 = vunpack.c.h.b16 %v663
        %v711 = vpack.c.b16 %v709, %v709
        %v712 = vpack.c.b16 %v710, %v710
        %v714 = vshrl.u32 %v711, 16
        %v716 = vrot.slane %v714, 6
        %v717 = vshll.u32 %v711, 16
        %v719 = vrot.slane %v717, 7
        %v720 = vor.u32 %v716, %v719
        %v722 = vshrl.u32 %v712, 16
        %v724 = vrot.slane %v722, 6
        %v725 = vshll.u32 %v712, 16
        %v727 = vrot.slane %v725, 7
        %v728 = vor.u32 %v724, %v727
        %729 = vrot.lane.b32.xlu0 %v720, 108
        %v730 = vpop.permute.xlu0 %729
        %731 = vrot.lane.b32.xlu0 %v728, 108
        %v732 = vpop.permute.xlu0 %731
        %v733 = vsel %vm358, %v730, %v732
        %v736 = vrot.slane %v711, 3
        %v737 = vrot.slane %v712, 3
        %738 = vrot.lane.b32.xlu0 %v736, 92
        %v739 = vpop.permute.xlu0 %738
        %740 = vrot.lane.b32.xlu0 %v737, 92
        %v741 = vpop.permute.xlu0 %740
        %v742 = vsel %vm368, %v739, %v741
        %v745 = vrot.slane %v714, 7
        %v746 = vor.u32 %v745, %v717
        %v747 = vrot.slane %v722, 7
        %v748 = vor.u32 %v747, %v725
        %749 = vrot.lane.b32.xlu0 %v746, 91
        %v750 = vpop.permute.xlu0 %749
        %751 = vrot.lane.b32.xlu0 %v748, 91
        %v752 = vpop.permute.xlu0 %751
        %v753 = vsel %vm380, %v750, %v752
        %756 = vrot.lane.b32.xlu0 %v711, 90
        %v757 = vpop.permute.xlu0 %756
        %758 = vrot.lane.b32.xlu0 %v712, 90
        %v759 = vpop.permute.xlu0 %758
        %v760 = vsel %vm388, %v757, %v759
        %v761 = vsel %vm392, %v336, %v676
        %v762 = vsel %vm392, %v337, %v675
        %v765 = vsel %vm395, %v761, %v685
        %v768 = vsel %vm395, %v762, %v684
        %v769 = vsel %vm404, %v685, %v698
        %v770 = vsel %vm404, %v684, %v697
        %v773 = vsel %vm407, %v769, %v706
        %v775 = vsel %vm407, %v770, %v706
        %v776 = vsel %vm415, %v706, %v730
        %v777 = vsel %vm415, %v706, %v733
        %v780 = vsel %vm418, %v776, %v739
        %v783 = vsel %vm418, %v777, %v742
        %v784 = vsel %vm427, %v739, %v750
        %v785 = vsel %vm427, %v742, %v753
        %v788 = vsel %vm430, %v784, %v757
        %v792 = vsel %vm430, %v785, %v760
        %v794 = vsel %vm441, %v788, 0
        %v795 = vsel %vm441, %v792, 0
        %804 = vrot.lane.b32.xlu0 %v765, 19
        %v805 = vpop.permute.xlu0 %804
        %806 = vrot.lane.b32.xlu0 %v768, 19
        %v807 = vpop.permute.xlu0 %806
        %808 = vrot.lane.b32.xlu0 %v773, 19
        %v809 = vpop.permute.xlu0 %808
        %810 = vrot.lane.b32.xlu0 %v775, 19
        %v811 = vpop.permute.xlu0 %810
        %812 = vrot.lane.b32.xlu0 %v780, 19
        %v813 = vpop.permute.xlu0 %812
        %814 = vrot.lane.b32.xlu0 %v783, 19
        %v815 = vpop.permute.xlu0 %814
        %816 = vrot.lane.b32.xlu0 %v794, 19
        %v817 = vpop.permute.xlu0 %816
        %818 = vrot.lane.b32.xlu0 %v795, 19
        %v819 = vpop.permute.xlu0 %818
        %v820 = vsel %vm528, %v805, %v807
        %v821 = vsel %vm528, %v809, %v811
        %v822 = vsel %vm528, %v813, %v815
        %v823 = vsel %vm528, %v817, %v819
        %828 = vmatprep.subr.bf16.mxu0 0
        %829 = vmatpush1.bf16.msra.mxu0 0
        %830 = vmatprep.subr.bf16.mxu0 0
        %831 = vmatpush1.bf16.msra.mxu0 0
        %832 = vmatprep.subr.bf16.mxu0 0
        %833 = vmatpush1.bf16.msra.mxu0 0
        %834 = vmatprep.subr.bf16.mxu0 0
        %835 = vmatpush1.bf16.msra.mxu0 0
        %836 = vmatprep.subr.bf16.mxu0 0
        %837 = vmatpush1.bf16.msra.mxu0 %v823
        %838 = vmatprep.subr.bf16.mxu0 0
        %839 = vmatpush1.bf16.msra.mxu0 %v822
        %840 = vmatprep.subr.bf16.mxu0 0
        %841 = vmatpush1.bf16.msra.mxu0 %v821
        %842 = vmatprep.subr.bf16.mxu0 0
        %843 = vmatpush1.bf16.msra.mxu0 %v820
        %844 = vmatprep.subr.bf16.mxu0 0
        %845 = vmatpush2.bf16.msra.mxu0 0
        %846 = vmatprep.subr.bf16.mxu0 0
        %847 = vmatpush2.bf16.msra.mxu0 0
        %848 = vmatprep.subr.bf16.mxu0 0
        %849 = vmatpush2.bf16.msra.mxu0 0
        %850 = vmatprep.subr.bf16.mxu0 0
        %851 = vmatpush2.bf16.msra.mxu0 0
        %852 = vmatprep.subr.bf16.mxu0 0
        %853 = vmatpush2.bf16.msra.mxu0 0
        %854 = vmatprep.subr.bf16.mxu0 0
        %855 = vmatpush2.bf16.msra.mxu0 0
        %856 = vmatprep.subr.bf16.mxu0 0
        %857 = vmatpush2.bf16.msra.mxu0 0
        %858 = vmatprep.subr.bf16.mxu0 0
        %859 = vmatpush2.bf16.msra.mxu0 0
        %860 = vmatprep.mubr.bf16.mxu0 0
        %861 = vmatmul.mubr.bf16.gmra.mxu0 %v539
        %v862 = vpop.f32.mrf.mxu0
        %v863 = vadd.f32 %v447, %v862
        %v864 = vpop.f32.mrf.mxu0
        %v865 = vpop.f32.mrf.mxu0
        %v866 = vadd.f32 %v452, %v865
        %v867 = vpop.f32.mrf.mxu0
        %868 = vmatprep.mubr.bf16.mxu0 0
        %869 = vmatmul.mubr.bf16.gmra.mxu0 %v542
        %v870 = vpop.f32.mrf.mxu0
        %v871 = vadd.f32 %v457, %v870
        %v872 = vpop.f32.mrf.mxu0
        %v873 = vpop.f32.mrf.mxu0
        %v874 = vadd.f32 %v462, %v873
        %v875 = vpop.f32.mrf.mxu0
        %876 = vmatprep.mubr.bf16.mxu0 0
        %877 = vmatmul.mubr.bf16.gmra.mxu0 %v545
        %v878 = vpop.f32.mrf.mxu0
        %v879 = vadd.f32 %v467, %v878
        %v880 = vpop.f32.mrf.mxu0
        %v881 = vpop.f32.mrf.mxu0
        %v882 = vadd.f32 %v472, %v881
        %v883 = vpop.f32.mrf.mxu0
        %884 = vmatprep.mubr.bf16.mxu0 0
        %885 = vmatmul.mubr.bf16.gmra.mxu0 %v548
        %v886 = vpop.f32.mrf.mxu0
        %v887 = vadd.f32 %v477, %v886
        %v888 = vpop.f32.mrf.mxu0
        %v889 = vpop.f32.mrf.mxu0
        %v890 = vadd.f32 %v482, %v889
        %v891 = vpop.f32.mrf.mxu0
        %892 = vdwg.mxu0
        %v893 = vmax.f32 %v863, 0.0
        %v894 = vmax.f32 %v866, 0.0
        %v895 = vmax.f32 %v871, 0.0
        %v896 = vmax.f32 %v874, 0.0
        %v897 = vmax.f32 %v879, 0.0
        %v898 = vmax.f32 %v882, 0.0
        %v899 = vmax.f32 %v887, 0.0
        %v900 = vmax.f32 %v890, 0.0
        %v901 = vld [vmem:[%s3 + $0x1] sm:$0x1]
        %v903 = vlaneseq
        %v904 = vshrl.u32 %v903, 7
        %v905 = vsub.s32 0, %v904
        %v906 = vrot.slane %v901, %v905
        %v908 = vmul.f32 %v893, %v906
        %v909 = vmul.f32 %v894, %v906
        %v910 = vmul.f32 %v895, %v906
        %v911 = vmul.f32 %v896, %v906
        %v912 = vmul.f32 %v897, %v906
        %v913 = vmul.f32 %v898, %v906
        %v914 = vmul.f32 %v899, %v906
        %v915 = vmul.f32 %v900, %v906
        %916 = vadd.xlane.f32.xlu0 %v908
        %v917 = vpop.xlane.xlu0 %916
        %918 = vadd.xlane.f32.xlu0 %v909
        %v919 = vpop.xlane.xlu0 %918
        %920 = vadd.xlane.f32.xlu0 %v910
        %v921 = vpop.xlane.xlu0 %920
        %922 = vadd.xlane.f32.xlu0 %v911
        %v923 = vpop.xlane.xlu0 %922
        %924 = vadd.xlane.f32.xlu0 %v912
        %v925 = vpop.xlane.xlu0 %924
        %926 = vadd.xlane.f32.xlu0 %v913
        %v927 = vpop.xlane.xlu0 %926
        %928 = vadd.xlane.f32.xlu0 %v914
        %v929 = vpop.xlane.xlu0 %928
        %930 = vadd.xlane.f32.xlu0 %v915
        %v931 = vpop.xlane.xlu0 %930
        %v932 = vadd.f32 %v654, %v917
        %v933 = vadd.f32 %v655, %v919
        %v934 = vadd.f32 %v656, %v921
        %v935 = vadd.f32 %v657, %v923
        %v936 = vadd.f32 %v658, %v925
        %v937 = vadd.f32 %v659, %v927
        %v938 = vadd.f32 %v660, %v929
        %v939 = vadd.f32 %v661, %v931
        %v940 = vld [vmem:[%s250 + $0xc] sm:$0xf]
        %v941 = vld [vmem:[%s250 + $0xc] sm:$0xff]
        %v944 = vrot.slane %v714, 4
        %v945 = vrot.slane %v717, 5
        %v946 = vor.u32 %v944, %v945
        %v947 = vrot.slane %v722, 4
        %v948 = vrot.slane %v725, 5
        %v949 = vor.u32 %v947, %v948
        %950 = vrot.lane.b32.xlu0 %v946, 127
        %v951 = vpop.permute.xlu0 %950
        %952 = vrot.lane.b32.xlu0 %v949, 127
        %v953 = vpop.permute.xlu0 %952
        %v954 = vsel %vm298, %v951, %v953
        %v957 = vrot.slane %v711, 1
        %v958 = vrot.slane %v712, 1
        %959 = vrot.lane.b32.xlu0 %v957, 126
        %v960 = vpop.permute.xlu0 %959
        %961 = vrot.lane.b32.xlu0 %v958, 126
        %v962 = vpop.permute.xlu0 %961
        %v963 = vsel %vm308, %v960, %v962
        %v966 = vrot.slane %v714, 5
        %v967 = vrot.slane %v717, 6
        %v968 = vor.u32 %v966, %v967
        %v969 = vrot.slane %v722, 5
        %v970 = vrot.slane %v725, 6
        %v971 = vor.u32 %v969, %v970
        %972 = vrot.lane.b32.xlu0 %v968, 110
        %v973 = vpop.permute.xlu0 %972
        %974 = vrot.lane.b32.xlu0 %v971, 110
        %v975 = vpop.permute.xlu0 %974
        %v976 = vsel %vm322, %v973, %v975
        %v980 = vunpack.c.l.b16 %v940
        %v981 = vpack.c.b16 %v980, %v980
        %v982 = vrot.slane %v981, 2
        %983 = vrot.lane.b32.xlu0 %v982, 109
        %v984 = vpop.permute.xlu0 %983
        %v987 = vunpack.c.l.b16 %v941
        %v988 = vunpack.c.h.b16 %v941
        %v989 = vpack.c.b16 %v987, %v987
        %v990 = vpack.c.b16 %v988, %v988
        %v992 = vshrl.u32 %v989, 16
        %v994 = vrot.slane %v992, 6
        %v995 = vshll.u32 %v989, 16
        %v997 = vrot.slane %v995, 7
        %v998 = vor.u32 %v994, %v997
        %v1000 = vshrl.u32 %v990, 16
        %v1002 = vrot.slane %v1000, 6
        %v1003 = vshll.u32 %v990, 16
        %v1005 = vrot.slane %v1003, 7
        %v1006 = vor.u32 %v1002, %v1005
        %1007 = vrot.lane.b32.xlu0 %v998, 108
        %v1008 = vpop.permute.xlu0 %1007
        %1009 = vrot.lane.b32.xlu0 %v1006, 108
        %v1010 = vpop.permute.xlu0 %1009
        %v1011 = vsel %vm358, %v1008, %v1010
        %v1014 = vrot.slane %v989, 3
        %v1015 = vrot.slane %v990, 3
        %1016 = vrot.lane.b32.xlu0 %v1014, 92
        %v1017 = vpop.permute.xlu0 %1016
        %1018 = vrot.lane.b32.xlu0 %v1015, 92
        %v1019 = vpop.permute.xlu0 %1018
        %v1020 = vsel %vm368, %v1017, %v1019
        %v1023 = vrot.slane %v992, 7
        %v1024 = vor.u32 %v1023, %v995
        %v1025 = vrot.slane %v1000, 7
        %v1026 = vor.u32 %v1025, %v1003
        %1027 = vrot.lane.b32.xlu0 %v1024, 91
        %v1028 = vpop.permute.xlu0 %1027
        %1029 = vrot.lane.b32.xlu0 %v1026, 91
        %v1030 = vpop.permute.xlu0 %1029
        %v1031 = vsel %vm380, %v1028, %v1030
        %1034 = vrot.lane.b32.xlu0 %v989, 90
        %v1035 = vpop.permute.xlu0 %1034
        %1036 = vrot.lane.b32.xlu0 %v990, 90
        %v1037 = vpop.permute.xlu0 %1036
        %v1038 = vsel %vm388, %v1035, %v1037
        %v1039 = vsel %vm392, %v711, %v954
        %v1040 = vsel %vm392, %v712, %v953
        %v1043 = vsel %vm395, %v1039, %v963
        %v1046 = vsel %vm395, %v1040, %v962
        %v1047 = vsel %vm404, %v963, %v976
        %v1048 = vsel %vm404, %v962, %v975
        %v1051 = vsel %vm407, %v1047, %v984
        %v1053 = vsel %vm407, %v1048, %v984
        %v1054 = vsel %vm415, %v984, %v1008
        %v1055 = vsel %vm415, %v984, %v1011
        %v1058 = vsel %vm418, %v1054, %v1017
        %v1061 = vsel %vm418, %v1055, %v1020
        %v1062 = vsel %vm427, %v1017, %v1028
        %v1063 = vsel %vm427, %v1020, %v1031
        %v1066 = vsel %vm430, %v1062, %v1035
        %v1070 = vsel %vm430, %v1063, %v1038
        %v1072 = vsel %vm441, %v1066, 0
        %v1073 = vsel %vm441, %v1070, 0
        %1082 = vrot.lane.b32.xlu0 %v1043, 19
        %v1083 = vpop.permute.xlu0 %1082
        %1084 = vrot.lane.b32.xlu0 %v1046, 19
        %v1085 = vpop.permute.xlu0 %1084
        %1086 = vrot.lane.b32.xlu0 %v1051, 19
        %v1087 = vpop.permute.xlu0 %1086
        %1088 = vrot.lane.b32.xlu0 %v1053, 19
        %v1089 = vpop.permute.xlu0 %1088
        %1090 = vrot.lane.b32.xlu0 %v1058, 19
        %v1091 = vpop.permute.xlu0 %1090
        %1092 = vrot.lane.b32.xlu0 %v1061, 19
        %v1093 = vpop.permute.xlu0 %1092
        %1094 = vrot.lane.b32.xlu0 %v1072, 19
        %v1095 = vpop.permute.xlu0 %1094
        %1096 = vrot.lane.b32.xlu0 %v1073, 19
        %v1097 = vpop.permute.xlu0 %1096
        %v1098 = vsel %vm528, %v1083, %v1085
        %v1099 = vsel %vm528, %v1087, %v1089
        %v1100 = vsel %vm528, %v1091, %v1093
        %v1101 = vsel %vm528, %v1095, %v1097
        %1106 = vmatprep.subr.bf16.mxu0 0
        %1107 = vmatpush1.bf16.msra.mxu0 0
        %1108 = vmatprep.subr.bf16.mxu0 0
        %1109 = vmatpush1.bf16.msra.mxu0 0
        %1110 = vmatprep.subr.bf16.mxu0 0
        %1111 = vmatpush1.bf16.msra.mxu0 0
        %1112 = vmatprep.subr.bf16.mxu0 0
        %1113 = vmatpush1.bf16.msra.mxu0 0
        %1114 = vmatprep.subr.bf16.mxu0 0
        %1115 = vmatpush1.bf16.msra.mxu0 %v1101
        %1116 = vmatprep.subr.bf16.mxu0 0
        %1117 = vmatpush1.bf16.msra.mxu0 %v1100
        %1118 = vmatprep.subr.bf16.mxu0 0
        %1119 = vmatpush1.bf16.msra.mxu0 %v1099
        %1120 = vmatprep.subr.bf16.mxu0 0
        %1121 = vmatpush1.bf16.msra.mxu0 %v1098
        %1122 = vmatprep.subr.bf16.mxu0 0
        %1123 = vmatpush2.bf16.msra.mxu0 0
        %1124 = vmatprep.subr.bf16.mxu0 0
        %1125 = vmatpush2.bf16.msra.mxu0 0
        %1126 = vmatprep.subr.bf16.mxu0 0
        %1127 = vmatpush2.bf16.msra.mxu0 0
        %1128 = vmatprep.subr.bf16.mxu0 0
        %1129 = vmatpush2.bf16.msra.mxu0 0
        %1130 = vmatprep.subr.bf16.mxu0 0
        %1131 = vmatpush2.bf16.msra.mxu0 0
        %1132 = vmatprep.subr.bf16.mxu0 0
        %1133 = vmatpush2.bf16.msra.mxu0 0
        %1134 = vmatprep.subr.bf16.mxu0 0
        %1135 = vmatpush2.bf16.msra.mxu0 0
        %1136 = vmatprep.subr.bf16.mxu0 0
        %1137 = vmatpush2.bf16.msra.mxu0 0
        %1138 = vmatprep.mubr.bf16.mxu0 0
        %1139 = vmatmul.mubr.bf16.gmra.mxu0 %v539
        %v1140 = vpop.f32.mrf.mxu0
        %v1141 = vadd.f32 %v447, %v1140
        %v1142 = vpop.f32.mrf.mxu0
        %v1143 = vpop.f32.mrf.mxu0
        %v1144 = vadd.f32 %v452, %v1143
        %v1145 = vpop.f32.mrf.mxu0
        %1146 = vmatprep.mubr.bf16.mxu0 0
        %1147 = vmatmul.mubr.bf16.gmra.mxu0 %v542
        %v1148 = vpop.f32.mrf.mxu0
        %v1149 = vadd.f32 %v457, %v1148
        %v1150 = vpop.f32.mrf.mxu0
        %v1151 = vpop.f32.mrf.mxu0
        %v1152 = vadd.f32 %v462, %v1151
        %v1153 = vpop.f32.mrf.mxu0
        %1154 = vmatprep.mubr.bf16.mxu0 0
        %1155 = vmatmul.mubr.bf16.gmra.mxu0 %v545
        %v1156 = vpop.f32.mrf.mxu0
        %v1157 = vadd.f32 %v467, %v1156
        %v1158 = vpop.f32.mrf.mxu0
        %v1159 = vpop.f32.mrf.mxu0
        %v1160 = vadd.f32 %v472, %v1159
        %v1161 = vpop.f32.mrf.mxu0
        %1162 = vmatprep.mubr.bf16.mxu0 0
        %1163 = vmatmul.mubr.bf16.gmra.mxu0 %v548
        %v1164 = vpop.f32.mrf.mxu0
        %v1165 = vadd.f32 %v477, %v1164
        %v1166 = vpop.f32.mrf.mxu0
        %v1167 = vpop.f32.mrf.mxu0
        %v1168 = vadd.f32 %v482, %v1167
        %v1169 = vpop.f32.mrf.mxu0
        %1170 = vdwg.mxu0
        %v1171 = vmax.f32 %v1141, 0.0
        %v1172 = vmax.f32 %v1144, 0.0
        %v1173 = vmax.f32 %v1149, 0.0
        %v1174 = vmax.f32 %v1152, 0.0
        %v1175 = vmax.f32 %v1157, 0.0
        %v1176 = vmax.f32 %v1160, 0.0
        %v1177 = vmax.f32 %v1165, 0.0
        %v1178 = vmax.f32 %v1168, 0.0
        %v1179 = vld [vmem:[%s3 + $0x2] sm:$0x1]
        %v1181 = vlaneseq
        %v1182 = vshrl.u32 %v1181, 7
        %v1183 = vsub.s32 0, %v1182
        %v1184 = vrot.slane %v1179, %v1183
        %v1186 = vmul.f32 %v1171, %v1184
        %v1187 = vmul.f32 %v1172, %v1184
        %v1188 = vmul.f32 %v1173, %v1184
        %v1189 = vmul.f32 %v1174, %v1184
        %v1190 = vmul.f32 %v1175, %v1184
        %v1191 = vmul.f32 %v1176, %v1184
        %v1192 = vmul.f32 %v1177, %v1184
        %v1193 = vmul.f32 %v1178, %v1184
        %1194 = vadd.xlane.f32.xlu0 %v1186
        %v1195 = vpop.xlane.xlu0 %1194
        %1196 = vadd.xlane.f32.xlu0 %v1187
        %v1197 = vpop.xlane.xlu0 %1196
        %1198 = vadd.xlane.f32.xlu0 %v1188
        %v1199 = vpop.xlane.xlu0 %1198
        %1200 = vadd.xlane.f32.xlu0 %v1189
        %v1201 = vpop.xlane.xlu0 %1200
        %1202 = vadd.xlane.f32.xlu0 %v1190
        %v1203 = vpop.xlane.xlu0 %1202
        %1204 = vadd.xlane.f32.xlu0 %v1191
        %v1205 = vpop.xlane.xlu0 %1204
        %1206 = vadd.xlane.f32.xlu0 %v1192
        %v1207 = vpop.xlane.xlu0 %1206
        %1208 = vadd.xlane.f32.xlu0 %v1193
        %v1209 = vpop.xlane.xlu0 %1208
        %v1210 = vadd.f32 %v932, %v1195
        %v1211 = vadd.f32 %v933, %v1197
        %v1212 = vadd.f32 %v934, %v1199
        %v1213 = vadd.f32 %v935, %v1201
        %v1214 = vadd.f32 %v936, %v1203
        %v1215 = vadd.f32 %v937, %v1205
        %v1216 = vadd.f32 %v938, %v1207
        %v1217 = vadd.f32 %v939, %v1209
        %v1218 = vmul.f32 %v1210, 0.00390625
        %v1219 = vmul.f32 %v1211, 0.00390625
        %v1220 = vmul.f32 %v1212, 0.00390625
        %v1221 = vmul.f32 %v1213, 0.00390625
        %v1222 = vmul.f32 %v1214, 0.00390625
        %v1223 = vmul.f32 %v1215, 0.00390625
        %v1224 = vmul.f32 %v1216, 0.00390625
        %v1225 = vmul.f32 %v1217, 0.00390625
        %v1226 = vld [vmem:[%s4] sm:$0xff]
        %v1227 = vld [vmem:[%s4 + $0x8] sm:$0xff]
        %v1228 = vld [vmem:[%s4 + $0x10] sm:$0xff]
        %v1229 = vld [vmem:[%s4 + $0x18] sm:$0xff]
        %v1230 = vld [vmem:[%s4 + $0x20] sm:$0xff]
        %v1231 = vld [vmem:[%s4 + $0x28] sm:$0xff]
        %v1232 = vld [vmem:[%s4 + $0x30] sm:$0xff]
        %v1233 = vld [vmem:[%s4 + $0x38] sm:$0xff]
        %v1234 = vmul.f32 %v1218, %v1226
        %v1235 = vmul.f32 %v1219, %v1227
        %v1236 = vmul.f32 %v1220, %v1228
        %v1237 = vmul.f32 %v1221, %v1229
        %v1238 = vmul.f32 %v1222, %v1230
        %v1239 = vmul.f32 %v1223, %v1231
        %v1240 = vmul.f32 %v1224, %v1232
        %v1241 = vmul.f32 %v1225, %v1233
        %vm1242 = vcmask 7168
        %v1243 = vsel %vm1242, %v1234, 0.0
        %v1244 = vsel %vm1242, %v1235, 0.0
        %v1245 = vadd.f32 %v1243, %v1244
        %v1246 = vsel %vm1242, %v1236, 0.0
        %v1247 = vadd.f32 %v1245, %v1246
        %v1248 = vsel %vm1242, %v1237, 0.0
        %v1249 = vadd.f32 %v1247, %v1248
        %v1250 = vsel %vm1242, %v1238, 0.0
        %v1251 = vadd.f32 %v1249, %v1250
        %v1252 = vsel %vm1242, %v1239, 0.0
        %v1253 = vadd.f32 %v1251, %v1252
        %v1254 = vsel %vm1242, %v1240, 0.0
        %v1255 = vadd.f32 %v1253, %v1254
        %v1256 = vsel %vm1242, %v1241, 0.0
        %v1257 = vadd.f32 %v1255, %v1256
        %1258 = vadd.xlane.f32.xlu0 %v1257
        %v1259 = vpop.xlane.xlu0 %1258
        %v1260 = vrot.slane %v1259, 4
        %v1261 = vadd.f32 %v1259, %v1260
        %v1262 = vrot.slane %v1261, 2
        %v1263 = vadd.f32 %v1261, %v1262
        %v1264 = vrot.slane %v1263, 1
        %v1265 = vadd.f32 %v1263, %v1264
        %s1266 = vtos %v1265
        %s1267 = sld [smem:[#allocation2]]
        %s1268 = sadd.f32 %s1266, %s1267
        %v1269 = vstv %s1268
        %1270 = vst [vmem:[%s245] sm:$0xff] %v1269
        %s1271 = sand.u32 %s160, 1
        %s1272 = scalar_lea.sflag [#allocation4], %s1271
        %s1273 = sand.u32 %s160, 1
        %s1274 = smul.addr %s1273, 8
        %s1275 = scalar_lea.vmem [#allocation3], %s1274
        // Predicated region
        $region45: #{tpu_custom_call.1} parent=43 // pred_check
          %p1276 = pneg %p170
        $region46: #{tpu_custom_call.1} parent=43 // pred_check_branch
          %1278 = sbr.rel (%p1276) target = $region48
        $region47: #{tpu_custom_call.1} parent=43 // pred_region
          %s1280 = ssub.s32 128, 128
          %1281 = vsyncadd %s1272, %s1280
          %s1282 = smul.addr %s21, 128
          %s1283 = scalar_lea.hbm %s6, %s1282
          %s1285 = sshll.u32 %s1275, 4
          %s1286 = int_to_ptr.vmem [resolvable:$true] %s1285
          %1288 = dma.vmem_to_hbm [thread:$0]  %s1286, 128, %s1283, %s1272
        $region48: #{tpu_custom_call.1} parent=43 // pred_fallthru
          _
      $region44: #{tpu_custom_call.1} parent=5 // pred_fallthru
        _
      %p1289 = scmp.le.s32.totalorder 2, %s16
      // Predicated region
      $region49: #{tpu_custom_call.1} parent=5 // pred_check
        %p1290 = pneg %p1289
      $region50: #{tpu_custom_call.1} parent=5 // pred_check_branch
        %1292 = sbr.rel (%p1290) target = $region52
      $region51: #{tpu_custom_call.1} parent=5 // pred_region
        %s1293 = ssub.s32 %s16, 2
        // Predicated region
        $region53: #{tpu_custom_call.1} parent=51 // pred_check
          %p1294 = pneg %p176
        $region54: #{tpu_custom_call.1} parent=51 // pred_check_branch
          %1296 = sbr.rel (%p1294) target = $region56
        $region55: #{tpu_custom_call.1} parent=51 // pred_region
          %s1297 = sand.u32 %s161, 1
          %s1298 = scalar_lea.sflag [#allocation4], %s1297
          %s1299 = sand.u32 %s161, 1
          %s1300 = smul.addr %s1299, 8
          %s1301 = scalar_lea.vmem [#allocation3], %s1300
          %1302 = dma.done %s1298, 128
        $region56: #{tpu_custom_call.1} parent=51 // pred_fallthru
          _
      $region52: #{tpu_custom_call.1} parent=5 // pred_fallthru
        _
    $region6: #{tpu_custom_call.1} parent=1 // loop_footer
      %s20 = sadd.s32 1, %s16
    $region7: #{tpu_custom_call.1} parent=1 // loop_footer_branch
      %15 = sbr.rel target = $region3
    $region8: #{tpu_custom_call.1} parent=1 // loop_exit
      _
    %1303 = vsyncpa [#allocation4], 1
    %s1304 = scalar_lea.sflag [#allocation4], 1
    %1305 = vsyncpa %s1304, 1

</llo_original>
